<compile_context>
chip_gen: v7x
topology: tpu7x:2x2x1
jax: 0.10.0
libtpu: 0.0.40
codegen_flags: <defaults>
</compile_context>

<pallas_src>
import jax
import jax.numpy as jnp
from jax.experimental import pallas as pl
from jax.experimental.pallas import tpu as pltpu


def _round_up(x, m):
    return ((x + m - 1) // m) * m


def _conv1d_as_dense(w, L):
    """PyTorch Conv1d weight (Cout, Cin, K) -> dense (Cin*L, Cout*Lout) matrix
    acting on channel-major flattened (c*L + l) vectors (valid conv, stride 1)."""
    cout, cin, K = w.shape
    Lout = L - K + 1
    mat = jnp.zeros((cin, L, cout, Lout), dtype=jnp.float32)
    lo = jnp.arange(Lout)
    for k in range(K):
        # mat[ci, lo+k, co, lo] = w[co, ci, k]
        val = jnp.broadcast_to(w[:, :, k].T, (Lout, cin, cout))
        mat = mat.at[:, lo + k, :, lo].set(val)
    return mat.reshape(cin * L, cout * Lout)


def _augment(w_mat, b_row, carry_ones):
    """Fold a bias into a GEMM: [W ; b], optionally with an extra output column
    that regenerates the ones column for the next layer (ReLU(1) == 1)."""
    kin, nout = w_mat.shape
    ncol = nout + (1 if carry_ones else 0)
    m = jnp.zeros((kin + 1, ncol), jnp.float32)
    m = m.at[:kin, :nout].set(w_mat)
    m = m.at[kin, :nout].set(b_row)
    if carry_ones:
        m = m.at[kin, nout].set(1.0)
    return m


def _make_kernel(n_chunks, sub):
    def kernel(x_ref, w1_ref, w2_ref, wd1_ref, wd2_ref, out_ref):
        # Static sub-chunk split over the batch tile: the GEMMs of chunk k can
        # overlap the ReLU / bf16-cast epilogue of chunk k-1 (fully unrolled,
        # so the LLO scheduler sees all of it in one region).
        for c in range(n_chunks):
            rows = pl.ds(c * sub, sub)
            xc = x_ref[rows, :]
            h1 = jnp.maximum(
                jnp.dot(xc, w1_ref[...], preferred_element_type=jnp.float32),
                0.0)
            h2 = jnp.maximum(
                jnp.dot(h1.astype(w2_ref.dtype), w2_ref[...],
                        preferred_element_type=jnp.float32), 0.0)
            d1 = jnp.maximum(
                jnp.dot(h2.astype(wd1_ref.dtype), wd1_ref[...],
                        preferred_element_type=jnp.float32), 0.0)
            o = jnp.maximum(
                jnp.dot(d1.astype(wd2_ref.dtype), wd2_ref[...],
                        preferred_element_type=jnp.float32), 0.0)
            out_ref[rows, :] = o.astype(out_ref.dtype)
    return kernel


def network_forward(x_ncl, params, *, block_b=2048, compute_dtype=jnp.bfloat16):
    """x_ncl: (B, 7, L) like PyTorch NCW input.  params are PyTorch-shaped."""
    w1, b1, w2, b2, wd1, bd1, wd2, bd2 = params
    B, cin, L = x_ncl.shape
    K = w1.shape[2]
    L1 = L - K + 1
    L2 = L1 - K + 1
    n_lambda = wd2.shape[0]
    n_pad = _round_up(n_lambda, 128)          # lane-dense output width

    # ---- wrapper-side layout glue (plain JAX, tiny tensors) ----
    # Conv layers as banded matrices on channel-major flattened vectors;
    # biases folded in as an extra GEMM row driven by x's appended ones column.
    w1_mat = _augment(_conv1d_as_dense(w1, L), jnp.repeat(b1, L1), True)
    w2_mat = _augment(_conv1d_as_dense(w2, L1), jnp.repeat(b2, L2), True)
    wd1_mat = _augment(wd1.T, bd1, True)
    wd2_pad = jnp.zeros((wd2.shape[1], n_pad), jnp.float32)
    wd2_pad = wd2_pad.at[:, :n_lambda].set(wd2.T)
    bd2_pad = jnp.zeros((n_pad,), jnp.float32).at[:n_lambda].set(bd2)
    wd2_mat = _augment(wd2_pad, bd2_pad, False)
    w1_mat, w2_mat, wd1_mat, wd2_mat = (
        m.astype(compute_dtype) for m in (w1_mat, w2_mat, wd1_mat, wd2_mat))

    # ---- batch tiling ----
    # Big tiles (HBM/overhead-bound kernel), but cap at ceil(B/2) so there are
    # >= 2 "parallel" grid steps whenever B is large (v7x megacore sharding).
    align = 16                                # bf16 sublane packing
    b_aligned = _round_up(max(B, align), align)
    tb = min(block_b, _round_up(pl.cdiv(b_aligned, 2), align))
    Bp = _round_up(B, tb)                     # every grid block is full
    grid = (Bp // tb,)

    # In-kernel sub-chunking of the batch tile (MXU/VPU overlap).
    if tb >= 1024 and tb % (4 * align) == 0:
        n_chunks = 4
    elif tb >= 256 and tb % (2 * align) == 0:
        n_chunks = 2
    else:
        n_chunks = 1
    sub = tb // n_chunks

    # x padded to (Bp, 7L + 1): channel-major flatten + ones column (bias).
    kin1 = cin * L + 1
    x_aug = jnp.zeros((Bp, kin1), jnp.float32)
    x_aug = x_aug.at[:B, :cin * L].set(x_ncl.reshape(B, cin * L))
    x_aug = x_aug.at[:B, cin * L].set(1.0)
    x_aug = x_aug.astype(compute_dtype)

    kernel = _make_kernel(n_chunks, sub)

    def run(single_buffer_weights):
        if single_buffer_weights:
            def resident(arr):                # grid-invariant: 1 VMEM buffer
                return pl.BlockSpec(arr.shape, lambda i: (0, 0),
                                    pipeline_mode=pl.Buffered(1))
        else:
            def resident(arr):
                return pl.BlockSpec(arr.shape, lambda i: (0, 0))

        return pl.pallas_call(
            kernel,
            out_shape=jax.ShapeDtypeStruct((Bp, n_pad), compute_dtype),
            grid=grid,
            in_specs=[
                pl.BlockSpec((tb, kin1), lambda i: (i, 0)),
                resident(w1_mat), resident(w2_mat),
                resident(wd1_mat), resident(wd2_mat),
            ],
            out_specs=pl.BlockSpec((tb, n_pad), lambda i: (i, 0)),
            compiler_params=pltpu.CompilerParams(
                dimension_semantics=("parallel",)),
        )(x_aug, w1_mat, w2_mat, wd1_mat, wd2_mat)

    try:
        out_padded = run(single_buffer_weights=True)
    except Exception:
        # Fallback if this JAX build rejects buffer_count=1 single-buffering.
        out_padded = run(single_buffer_weights=False)

    return out_padded[:B, :n_lambda].astype(jnp.float32)


def reference_forward(x_ncl, params):
    """Pure-JAX f32 reference matching the PyTorch module exactly (NCW layout)."""
    w1, b1, w2, b2, wd1, bd1, wd2, bd2 = params

    def conv1d(x, w, b):  # x (B,Cin,L), w (Cout,Cin,K)
        K = w.shape[2]
        Lout = x.shape[2] - K + 1
        cols = jnp.stack([x[:, :, k:k + Lout] for k in range(K)], axis=-1)
        return jnp.einsum('bclk,ock->bol', cols, w) + b[None, :, None]

    h = jax.nn.relu(conv1d(x_ncl, w1, b1))
    h = jax.nn.relu(conv1d(h, w2, b2))
    h = h.reshape(h.shape[0], -1)                 # PyTorch Flatten: c*L2 + l
    h = jax.nn.relu(h @ wd1.T + bd1)
    return jax.nn.relu(h @ wd2.T + bd2)


if __name__ == "__main__":
    # Small, consistent shapes: N_depths = L - 4 (two valid 3-tap convs).
    B, N_depths, N_lambda = 2, 8, 16
    L = N_depths + 4  # 12

    key = jax.random.PRNGKey(0)
    ks = jax.random.split(key, 9)
    # Deterministic synthetic parameters with PyTorch shapes.
    w1 = 0.1 * jax.random.normal(ks[0], (7, 7, 3), jnp.float32)
    b1 = 0.1 * jax.random.normal(ks[1], (7,), jnp.float32)
    w2 = 0.1 * jax.random.normal(ks[2], (14, 7, 3), jnp.float32)
    b2 = 0.1 * jax.random.normal(ks[3], (14,), jnp.float32)
    wd1 = 0.1 * jax.random.normal(ks[4], (60, N_depths * 14), jnp.float32)
    bd1 = 0.1 * jax.random.normal(ks[5], (60,), jnp.float32)
    wd2 = 0.1 * jax.random.normal(ks[6], (N_lambda, 60), jnp.float32)
    bd2 = 0.1 * jax.random.normal(ks[7], (N_lambda,), jnp.float32)
    params = (w1, b1, w2, b2, wd1, bd1, wd2, bd2)

    x = jax.random.normal(ks[8], (B, 7, L), jnp.float32)  # PyTorch NCW input

    out = jax.block_until_ready(network_forward(x, params))
    ref = jax.block_until_ready(reference_forward(x, params))

    assert out.shape == (B, N_lambda)
    # bf16 matmul operands + bf16 output (f32 accumulation) -> tolerance-equal.
    assert jnp.allclose(out, ref, atol=3e-2, rtol=3e-2), "mismatch vs reference"
    print("KERNEL_OK")
</pallas_src>

<mosaic_0001>
module attributes {stable_mosaic.version = 11 : i64} {
  func.func @kernel(%arg0: i32, %arg1: memref<16x85xbf16, #tpu.memory_space<vmem>>, %arg2: memref<85x71xbf16, #tpu.memory_space<vmem>>, %arg3: memref<71x113xbf16, #tpu.memory_space<vmem>>, %arg4: memref<113x61xbf16, #tpu.memory_space<vmem>>, %arg5: memref<61x128xbf16, #tpu.memory_space<vmem>>, %arg6: memref<16x128xbf16, #tpu.memory_space<vmem>>) attributes {dimension_semantics = [#tpu.dimension_semantics<parallel>], iteration_bounds = array<i64: 1>, scalar_prefetch = 0 : i64, scratch_operands = 0 : i64, tpu.core_type = #tpu.core_type<tc>, window_params = [{transform_indices = @transform_0, window_bounds = array<i64: 16, 85>}, {pipeline_mode = #tpu.pipeline_mode<synchronous>, transform_indices = @transform_1, window_bounds = array<i64: 85, 71>}, {pipeline_mode = #tpu.pipeline_mode<synchronous>, transform_indices = @transform_2, window_bounds = array<i64: 71, 113>}, {pipeline_mode = #tpu.pipeline_mode<synchronous>, transform_indices = @transform_3, window_bounds = array<i64: 113, 61>}, {pipeline_mode = #tpu.pipeline_mode<synchronous>, transform_indices = @transform_4, window_bounds = array<i64: 61, 128>}, {transform_indices = @transform_5, window_bounds = array<i64: 16, 128>}]} {
    %c0 = arith.constant 0 : index
    %c0_0 = arith.constant 0 : index
    %0 = vector.load %arg1[%c0, %c0_0] : memref<16x85xbf16, #tpu.memory_space<vmem>>, vector<16x85xbf16>
    %c0_1 = arith.constant 0 : index
    %c0_2 = arith.constant 0 : index
    %1 = vector.load %arg2[%c0_1, %c0_2] : memref<85x71xbf16, #tpu.memory_space<vmem>>, vector<85x71xbf16>
    %cst = arith.constant dense<0.000000e+00> : vector<16x71xf32>
    %2 = tpu.matmul %0, %1, %cst {dimension_numbers = #tpu.dot_dimension_numbers<[1], [0], [0], [1], [0, 0, 1, 1], [], []>} : vector<16x85xbf16>, vector<85x71xbf16>, vector<16x71xf32> -> vector<16x71xf32>
    %cst_3 = arith.constant 0.000000e+00 : f32
    %3 = vector.broadcast %cst_3 : f32 to vector<16x71xf32>
    %4 = arith.maximumf %2, %3 : vector<16x71xf32>
    %5 = arith.truncf %4 : vector<16x71xf32> to vector<16x71xbf16>
    %c0_4 = arith.constant 0 : index
    %c0_5 = arith.constant 0 : index
    %6 = vector.load %arg3[%c0_4, %c0_5] : memref<71x113xbf16, #tpu.memory_space<vmem>>, vector<71x113xbf16>
    %cst_6 = arith.constant dense<0.000000e+00> : vector<16x113xf32>
    %7 = tpu.matmul %5, %6, %cst_6 {dimension_numbers = #tpu.dot_dimension_numbers<[1], [0], [0], [1], [0, 0, 1, 1], [], []>} : vector<16x71xbf16>, vector<71x113xbf16>, vector<16x113xf32> -> vector<16x113xf32>
    %cst_7 = arith.constant 0.000000e+00 : f32
    %8 = vector.broadcast %cst_7 : f32 to vector<16x113xf32>
    %9 = arith.maximumf %7, %8 : vector<16x113xf32>
    %10 = arith.truncf %9 : vector<16x113xf32> to vector<16x113xbf16>
    %c0_8 = arith.constant 0 : index
    %c0_9 = arith.constant 0 : index
    %11 = vector.load %arg4[%c0_8, %c0_9] : memref<113x61xbf16, #tpu.memory_space<vmem>>, vector<113x61xbf16>
    %cst_10 = arith.constant dense<0.000000e+00> : vector<16x61xf32>
    %12 = tpu.matmul %10, %11, %cst_10 {dimension_numbers = #tpu.dot_dimension_numbers<[1], [0], [0], [1], [0, 0, 1, 1], [], []>} : vector<16x113xbf16>, vector<113x61xbf16>, vector<16x61xf32> -> vector<16x61xf32>
    %cst_11 = arith.constant 0.000000e+00 : f32
    %13 = vector.broadcast %cst_11 : f32 to vector<16x61xf32>
    %14 = arith.maximumf %12, %13 : vector<16x61xf32>
    %15 = arith.truncf %14 : vector<16x61xf32> to vector<16x61xbf16>
    %c0_12 = arith.constant 0 : index
    %c0_13 = arith.constant 0 : index
    %16 = vector.load %arg5[%c0_12, %c0_13] : memref<61x128xbf16, #tpu.memory_space<vmem>>, vector<61x128xbf16>
    %cst_14 = arith.constant dense<0.000000e+00> : vector<16x128xf32>
    %17 = tpu.matmul %15, %16, %cst_14 {dimension_numbers = #tpu.dot_dimension_numbers<[1], [0], [0], [1], [0, 0, 1, 1], [], []>} : vector<16x61xbf16>, vector<61x128xbf16>, vector<16x128xf32> -> vector<16x128xf32>
    %cst_15 = arith.constant 0.000000e+00 : f32
    %18 = vector.broadcast %cst_15 : f32 to vector<16x128xf32>
    %19 = arith.maximumf %17, %18 : vector<16x128xf32>
    %20 = arith.truncf %19 : vector<16x128xf32> to vector<16x128xbf16>
    %c0_16 = arith.constant 0 : index
    %c0_17 = arith.constant 0 : index
    %21 = vector.load %arg6[%c0_16, %c0_17] : memref<16x128xbf16, #tpu.memory_space<vmem>>, vector<16x128xbf16>
    tpu.vector_store %arg6[%c0_16, %c0_17], %20 {strides = array<i32>} : memref<16x128xbf16, #tpu.memory_space<vmem>>, vector<16x128xbf16>,
    return
  }
  func.func @transform_0(%arg0: i32) -> (i32, i32) {
    %c0_i32 = arith.constant 0 : i32
    %c0_i32_0 = arith.constant 0 : i32
    return %arg0, %c0_i32 : i32, i32
  }
  func.func @transform_1(%arg0: i32) -> (i32, i32) {
    %c0_i32 = arith.constant 0 : i32
    %c0_i32_0 = arith.constant 0 : i32
    %c0_i32_1 = arith.constant 0 : i32
    return %c0_i32, %c0_i32_0 : i32, i32
  }
  func.func @transform_2(%arg0: i32) -> (i32, i32) {
    %c0_i32 = arith.constant 0 : i32
    %c0_i32_0 = arith.constant 0 : i32
    %c0_i32_1 = arith.constant 0 : i32
    return %c0_i32, %c0_i32_0 : i32, i32
  }
  func.func @transform_3(%arg0: i32) -> (i32, i32) {
    %c0_i32 = arith.constant 0 : i32
    %c0_i32_0 = arith.constant 0 : i32
    %c0_i32_1 = arith.constant 0 : i32
    return %c0_i32, %c0_i32_0 : i32, i32
  }
  func.func @transform_4(%arg0: i32) -> (i32, i32) {
    %c0_i32 = arith.constant 0 : i32
    %c0_i32_0 = arith.constant 0 : i32
    %c0_i32_1 = arith.constant 0 : i32
    return %c0_i32, %c0_i32_0 : i32, i32
  }
  func.func @transform_5(%arg0: i32) -> (i32, i32) {
    %c0_i32 = arith.constant 0 : i32
    %c0_i32_0 = arith.constant 0 : i32
    return %arg0, %c0_i32 : i32, i32
  }
}

module attributes {stable_mosaic.version = 11 : i64} {
  func.func @kernel(%arg0: i32, %arg1: memref<16x85xbf16, #tpu.memory_space<vmem>>, %arg2: memref<85x71xbf16, #tpu.memory_space<vmem>>, %arg3: memref<71x113xbf16, #tpu.memory_space<vmem>>, %arg4: memref<113x61xbf16, #tpu.memory_space<vmem>>, %arg5: memref<61x128xbf16, #tpu.memory_space<vmem>>, %arg6: memref<16x128xbf16, #tpu.memory_space<vmem>>) attributes {dimension_semantics = [#tpu.dimension_semantics<parallel>], iteration_bounds = array<i64: 1>, scalar_prefetch = 0 : i64, scratch_operands = 0 : i64, tpu.core_type = #tpu.core_type<tc>, window_params = [{transform_indices = @transform_0, window_bounds = array<i64: 16, 85>}, {pipeline_mode = #tpu.pipeline_mode<synchronous>, transform_indices = @transform_1, window_bounds = array<i64: 85, 71>}, {pipeline_mode = #tpu.pipeline_mode<synchronous>, transform_indices = @transform_2, window_bounds = array<i64: 71, 113>}, {pipeline_mode = #tpu.pipeline_mode<synchronous>, transform_indices = @transform_3, window_bounds = array<i64: 113, 61>}, {pipeline_mode = #tpu.pipeline_mode<synchronous>, transform_indices = @transform_4, window_bounds = array<i64: 61, 128>}, {transform_indices = @transform_5, window_bounds = array<i64: 16, 128>}]} {
    %c0 = arith.constant 0 : index
    %c0_0 = arith.constant 0 : index
    %0 = vector.load %arg1[%c0, %c0_0] : memref<16x85xbf16, #tpu.memory_space<vmem>>, vector<16x85xbf16>
    %c0_1 = arith.constant 0 : index
    %c0_2 = arith.constant 0 : index
    %1 = vector.load %arg2[%c0_1, %c0_2] : memref<85x71xbf16, #tpu.memory_space<vmem>>, vector<85x71xbf16>
    %cst = arith.constant dense<0.000000e+00> : vector<16x71xf32>
    %2 = tpu.matmul %0, %1, %cst {dimension_numbers = #tpu.dot_dimension_numbers<[1], [0], [0], [1], [0, 0, 1, 1], [], []>} : vector<16x85xbf16>, vector<85x71xbf16>, vector<16x71xf32> -> vector<16x71xf32>
    %cst_3 = arith.constant 0.000000e+00 : f32
    %3 = vector.broadcast %cst_3 : f32 to vector<16x71xf32>
    %4 = arith.maximumf %2, %3 : vector<16x71xf32>
    %5 = arith.truncf %4 : vector<16x71xf32> to vector<16x71xbf16>
    %c0_4 = arith.constant 0 : index
    %c0_5 = arith.constant 0 : index
    %6 = vector.load %arg3[%c0_4, %c0_5] : memref<71x113xbf16, #tpu.memory_space<vmem>>, vector<71x113xbf16>
    %cst_6 = arith.constant dense<0.000000e+00> : vector<16x113xf32>
    %7 = tpu.matmul %5, %6, %cst_6 {dimension_numbers = #tpu.dot_dimension_numbers<[1], [0], [0], [1], [0, 0, 1, 1], [], []>} : vector<16x71xbf16>, vector<71x113xbf16>, vector<16x113xf32> -> vector<16x113xf32>
    %cst_7 = arith.constant 0.000000e+00 : f32
    %8 = vector.broadcast %cst_7 : f32 to vector<16x113xf32>
    %9 = arith.maximumf %7, %8 : vector<16x113xf32>
    %10 = arith.truncf %9 : vector<16x113xf32> to vector<16x113xbf16>
    %c0_8 = arith.constant 0 : index
    %c0_9 = arith.constant 0 : index
    %11 = vector.load %arg4[%c0_8, %c0_9] : memref<113x61xbf16, #tpu.memory_space<vmem>>, vector<113x61xbf16>
    %cst_10 = arith.constant dense<0.000000e+00> : vector<16x61xf32>
    %12 = tpu.matmul %10, %11, %cst_10 {dimension_numbers = #tpu.dot_dimension_numbers<[1], [0], [0], [1], [0, 0, 1, 1], [], []>} : vector<16x113xbf16>, vector<113x61xbf16>, vector<16x61xf32> -> vector<16x61xf32>
    %cst_11 = arith.constant 0.000000e+00 : f32
    %13 = vector.broadcast %cst_11 : f32 to vector<16x61xf32>
    %14 = arith.maximumf %12, %13 : vector<16x61xf32>
    %15 = arith.truncf %14 : vector<16x61xf32> to vector<16x61xbf16>
    %c0_12 = arith.constant 0 : index
    %c0_13 = arith.constant 0 : index
    %16 = vector.load %arg5[%c0_12, %c0_13] : memref<61x128xbf16, #tpu.memory_space<vmem>>, vector<61x128xbf16>
    %cst_14 = arith.constant dense<0.000000e+00> : vector<16x128xf32>
    %17 = tpu.matmul %15, %16, %cst_14 {dimension_numbers = #tpu.dot_dimension_numbers<[1], [0], [0], [1], [0, 0, 1, 1], [], []>} : vector<16x61xbf16>, vector<61x128xbf16>, vector<16x128xf32> -> vector<16x128xf32>
    %cst_15 = arith.constant 0.000000e+00 : f32
    %18 = vector.broadcast %cst_15 : f32 to vector<16x128xf32>
    %19 = arith.maximumf %17, %18 : vector<16x128xf32>
    %20 = arith.truncf %19 : vector<16x128xf32> to vector<16x128xbf16>
    %c0_16 = arith.constant 0 : index
    %c0_17 = arith.constant 0 : index
    %21 = vector.load %arg6[%c0_16, %c0_17] : memref<16x128xbf16, #tpu.memory_space<vmem>>, vector<16x128xbf16>
    tpu.vector_store %arg6[%c0_16, %c0_17], %20 {strides = array<i32>} : memref<16x128xbf16, #tpu.memory_space<vmem>>, vector<16x128xbf16>,
    return
  }
  func.func @transform_0(%arg0: i32) -> (i32, i32) {
    %c0_i32 = arith.constant 0 : i32
    %c0_i32_0 = arith.constant 0 : i32
    return %arg0, %c0_i32 : i32, i32
  }
  func.func @transform_1(%arg0: i32) -> (i32, i32) {
    %c0_i32 = arith.constant 0 : i32
    %c0_i32_0 = arith.constant 0 : i32
    %c0_i32_1 = arith.constant 0 : i32
    return %c0_i32, %c0_i32_0 : i32, i32
  }
  func.func @transform_2(%arg0: i32) -> (i32, i32) {
    %c0_i32 = arith.constant 0 : i32
    %c0_i32_0 = arith.constant 0 : i32
    %c0_i32_1 = arith.constant 0 : i32
    return %c0_i32, %c0_i32_0 : i32, i32
  }
  func.func @transform_3(%arg0: i32) -> (i32, i32) {
    %c0_i32 = arith.constant 0 : i32
    %c0_i32_0 = arith.constant 0 : i32
    %c0_i32_1 = arith.constant 0 : i32
    return %c0_i32, %c0_i32_0 : i32, i32
  }
  func.func @transform_4(%arg0: i32) -> (i32, i32) {
    %c0_i32 = arith.constant 0 : i32
    %c0_i32_0 = arith.constant 0 : i32
    %c0_i32_1 = arith.constant 0 : i32
    return %c0_i32, %c0_i32_0 : i32, i32
  }
  func.func @transform_5(%arg0: i32) -> (i32, i32) {
    %c0_i32 = arith.constant 0 : i32
    %c0_i32_0 = arith.constant 0 : i32
    return %arg0, %c0_i32 : i32, i32
  }
}

</mosaic_0001>

<llo_original>
// kernel: tpu_custom_call.1
$region0: #{tpu_custom_call.1}
  #allocation0 [shape = 'u32[]', space=smem, size = 0x4, offset = 0x4, fixed_abs, tag = 'smem constant byte address 0x4 - core index']
  #allocation1 [shape = 'u32[144,128]{1,0:T(1,128)}', space=vmem, size = 0x12000, scoped, tag = 'internal scratch']
  %s0 = inlined_call_operand.vmem [shape: bf16[16,85], index: 0, kind: input, shape index: {}]
  %s1 = inlined_call_operand.vmem [shape: bf16[85,71], index: 1, kind: input, shape index: {}]
  %s2 = inlined_call_operand.vmem [shape: bf16[71,113], index: 2, kind: input, shape index: {}]
  %s3 = inlined_call_operand.vmem [shape: bf16[113,61], index: 3, kind: input, shape index: {}]
  %s4 = inlined_call_operand.vmem [shape: bf16[61,128], index: 4, kind: input, shape index: {}]
  %s5 = inlined_call_operand.hbm [shape: bf16[16,128], index: 5, kind: output, shape index: {}]
  %s6 = sld [smem:[#allocation0]]
  $region30: #{tpu_custom_call.1} parent=0
    _
  %s8 = ssub.s32 1, %s6
  %s9 = scalar_select 0, %s8, %s6
  $region1: #{tpu_custom_call.1} parent=0
    #allocation2 [shape = 'u8[4096]{0}', space=vmem, size = 0x1000, scoped, tag = 'output window, operand 0, single buffered']
    #allocation3 [shape = 's32[1]{0}', space=sflag, size = 0x4, scoped, tag = 'scoped memory for tpu_custom_call.1']
    %10 = vsyncpa [#allocation3], 0
    // Predicated region
    $region2: #{tpu_custom_call.1} parent=1 // pred_check
      _
    $region3: #{tpu_custom_call.1} parent=1 // pred_check_branch
      %12 = sbr.rel (0) target = $region5
    $region4: #{tpu_custom_call.1} parent=1 // pred_region
      _
    $region5: #{tpu_custom_call.1} parent=1 // pred_fallthru
      _
    // Predicated region
    $region6: #{tpu_custom_call.1} parent=1 // pred_check
      _
    $region7: #{tpu_custom_call.1} parent=1 // pred_check_branch
      %14 = sbr.rel (0) target = $region9
    $region8: #{tpu_custom_call.1} parent=1 // pred_region
      _
    $region9: #{tpu_custom_call.1} parent=1 // pred_fallthru
      _
    // Predicated region
    $region10: #{tpu_custom_call.1} parent=1 // pred_check
      _
    $region11: #{tpu_custom_call.1} parent=1 // pred_check_branch
      %16 = sbr.rel (0) target = $region13
    $region12: #{tpu_custom_call.1} parent=1 // pred_region
      _
    $region13: #{tpu_custom_call.1} parent=1 // pred_fallthru
      _
    // Predicated region
    $region14: #{tpu_custom_call.1} parent=1 // pred_check
      _
    $region15: #{tpu_custom_call.1} parent=1 // pred_check_branch
      %18 = sbr.rel (0) target = $region17
    $region16: #{tpu_custom_call.1} parent=1 // pred_region
      _
    $region17: #{tpu_custom_call.1} parent=1 // pred_fallthru
      _
    // Predicated region
    $region18: #{tpu_custom_call.1} parent=1 // pred_check
      _
    $region19: #{tpu_custom_call.1} parent=1 // pred_check_branch
      %20 = sbr.rel (0) target = $region21
    $region20: #{tpu_custom_call.1} parent=1 // pred_region
      _
    $region21: #{tpu_custom_call.1} parent=1 // pred_fallthru
      _
    %v22 = vld [vmem:[%s0] sm:$0xf]
    %v23 = vld [vmem:[%s0 + $0x4] sm:$0xf]
    %v24 = vld [vmem:[%s1] sm:$0xf]
    %v25 = vld [vmem:[%s1 + $0x4] sm:$0xf]
    %v26 = vld [vmem:[%s1 + $0x8] sm:$0xf]
    %v27 = vld [vmem:[%s1 + $0xc] sm:$0xf]
    %v28 = vld [vmem:[%s1 + $0x10] sm:$0xf]
    %v29 = vld [vmem:[%s1 + $0x14] sm:$0xf]
    %v30 = vld [vmem:[%s1 + $0x18] sm:$0xf]
    %v31 = vld [vmem:[%s1 + $0x1c] sm:$0xf]
    %v32 = vld [vmem:[%s1 + $0x20] sm:$0xf]
    %v33 = vld [vmem:[%s1 + $0x24] sm:$0xf]
    %v34 = vld [vmem:[%s1 + $0x28] sm:$0x7]
    %v37 = vunpack.c.l.b16 %v22
    %v38 = vunpack.c.l.b16 %v23
    %v39 = vpack.c.b16 %v38, %v37
    %v51 = vunpack.c.l.b16 %v24
    %v52 = vunpack.c.l.b16 %v25
    %v53 = vunpack.c.l.b16 %v26
    %v54 = vunpack.c.l.b16 %v27
    %v55 = vunpack.c.l.b16 %v28
    %v56 = vunpack.c.l.b16 %v29
    %v57 = vunpack.c.l.b16 %v30
    %v58 = vunpack.c.l.b16 %v31
    %v59 = vunpack.c.l.b16 %v32
    %v60 = vunpack.c.l.b16 %v33
    %v61 = vunpack.c.l.b16 %v34
    %v62 = vpack.c.b16 %v52, %v51
    %v63 = vpack.c.b16 %v54, %v53
    %v64 = vpack.c.b16 %v56, %v55
    %v65 = vpack.c.b16 %v58, %v57
    %v66 = vpack.c.b16 %v60, %v59
    %v67 = vpack.c.b16 %v61, %v61
    %vm73 = vcmask 695296
    %v75 = vsel %vm73, %v39, 0
    %vm77 = vcmask 1041408
    %vm78 = vcmask 1042432
    %v79 = vsel %vm77, 4294967295, 65535
    %v80 = vsel %vm78, %v79, 0
    %v82 = vand.u32 %v67, %v80
    %84 = vmatprep.subr.bf16.mxu0 0
    %85 = vmatpush1.bf16.msra.mxu0 %v62
    %86 = vmatprep.subr.bf16.mxu0 0
    %87 = vmatpush1.bf16.msra.mxu0 %v63
    %88 = vmatprep.subr.bf16.mxu0 0
    %89 = vmatpush1.bf16.msra.mxu0 %v64
    %90 = vmatprep.subr.bf16.mxu0 0
    %91 = vmatpush1.bf16.msra.mxu0 %v65
    %92 = vmatprep.subr.bf16.mxu0 0
    %93 = vmatpush1.bf16.msra.mxu0 %v66
    %94 = vmatprep.subr.bf16.mxu0 0
    %95 = vmatpush1.bf16.msra.mxu0 %v82
    %96 = vmatprep.subr.bf16.mxu0 0
    %97 = vmatpush1.bf16.msra.mxu0 0
    %98 = vmatprep.subr.bf16.mxu0 0
    %99 = vmatpush1.bf16.msra.mxu0 0
    %100 = vmatprep.subr.bf16.mxu0 0
    %101 = vmatpush1.bf16.msra.mxu0 0
    %102 = vmatprep.subr.bf16.mxu0 0
    %103 = vmatpush1.bf16.msra.mxu0 0
    %104 = vmatprep.subr.bf16.mxu0 0
    %105 = vmatpush1.bf16.msra.mxu0 0
    %106 = vmatprep.subr.bf16.mxu0 0
    %107 = vmatpush1.bf16.msra.mxu0 0
    %108 = vmatprep.subr.bf16.mxu0 0
    %109 = vmatpush1.bf16.msra.mxu0 0
    %110 = vmatprep.subr.bf16.mxu0 0
    %111 = vmatpush1.bf16.msra.mxu0 0
    %112 = vmatprep.subr.bf16.mxu0 0
    %113 = vmatpush1.bf16.msra.mxu0 0
    %114 = vmatprep.subr.bf16.mxu0 0
    %115 = vmatpush1.bf16.msra.mxu0 0
    %116 = vmatprep.mubr.bf16.mxu0 0
    %117 = vmatmul.mubr.bf16.gmra.mrb[0].mxu0 %v75
    %v118 = vpop.f32.mrb[0].mxu0
    %v119 = vadd.f32 0.0, %v118
    %v120 = vpop.f32.mrb[0].mxu0
    %v121 = vpop.f32.mrb[0].mxu0
    %v122 = vadd.f32 0.0, %v121
    %v123 = vpop.f32.mrb[0].mxu0
    %124 = vdwg.mxu0
    %v125 = vmax.f32 %v119, 0.0
    %v126 = vmax.f32 %v122, 0.0
    %v127 = vpack.c.bf16 %v126, %v125
    %v128 = vld [vmem:[%s2] sm:$0xf]
    %v129 = vld [vmem:[%s2 + $0x4] sm:$0xf]
    %v130 = vld [vmem:[%s2 + $0x8] sm:$0xf]
    %v131 = vld [vmem:[%s2 + $0xc] sm:$0xf]
    %v132 = vld [vmem:[%s2 + $0x10] sm:$0xf]
    %v133 = vld [vmem:[%s2 + $0x14] sm:$0xf]
    %v134 = vld [vmem:[%s2 + $0x18] sm:$0xf]
    %v135 = vld [vmem:[%s2 + $0x1c] sm:$0xf]
    %v136 = vld [vmem:[%s2 + $0x20] sm:$0xf]
    %v146 = vunpack.c.l.b16 %v128
    %v147 = vunpack.c.l.b16 %v129
    %v148 = vunpack.c.l.b16 %v130
    %v149 = vunpack.c.l.b16 %v131
    %v150 = vunpack.c.l.b16 %v132
    %v151 = vunpack.c.l.b16 %v133
    %v152 = vunpack.c.l.b16 %v134
    %v153 = vunpack.c.l.b16 %v135
    %v154 = vunpack.c.l.b16 %v136
    %v155 = vpack.c.b16 %v147, %v146
    %v156 = vpack.c.b16 %v149, %v148
    %v157 = vpack.c.b16 %v151, %v150
    %v158 = vpack.c.b16 %v153, %v152
    %v159 = vpack.c.b16 %v154, %v154
    %vm164 = vcmask 580608
    %v166 = vsel %vm164, %v127, 0
    %vm168 = vcmask 1043456
    %v169 = vsel %vm78, 4294967295, 65535
    %v170 = vsel %vm168, %v169, 0
    %v172 = vand.u32 %v159, %v170
    %174 = vmatprep.subr.bf16.mxu0 0
    %175 = vmatpush1.bf16.msra.mxu0 %v155
    %176 = vmatprep.subr.bf16.mxu0 0
    %177 = vmatpush1.bf16.msra.mxu0 %v156
    %178 = vmatprep.subr.bf16.mxu0 0
    %179 = vmatpush1.bf16.msra.mxu0 %v157
    %180 = vmatprep.subr.bf16.mxu0 0
    %181 = vmatpush1.bf16.msra.mxu0 %v158
    %182 = vmatprep.subr.bf16.mxu0 0
    %183 = vmatpush1.bf16.msra.mxu0 %v172
    %184 = vmatprep.subr.bf16.mxu0 0
    %185 = vmatpush1.bf16.msra.mxu0 0
    %186 = vmatprep.subr.bf16.mxu0 0
    %187 = vmatpush1.bf16.msra.mxu0 0
    %188 = vmatprep.subr.bf16.mxu0 0
    %189 = vmatpush1.bf16.msra.mxu0 0
    %190 = vmatprep.subr.bf16.mxu0 0
    %191 = vmatpush1.bf16.msra.mxu0 0
    %192 = vmatprep.subr.bf16.mxu0 0
    %193 = vmatpush1.bf16.msra.mxu0 0
    %194 = vmatprep.subr.bf16.mxu0 0
    %195 = vmatpush1.bf16.msra.mxu0 0
    %196 = vmatprep.subr.bf16.mxu0 0
    %197 = vmatpush1.bf16.msra.mxu0 0
    %198 = vmatprep.subr.bf16.mxu0 0
    %199 = vmatpush1.bf16.msra.mxu0 0
    %200 = vmatprep.subr.bf16.mxu0 0
    %201 = vmatpush1.bf16.msra.mxu0 0
    %202 = vmatprep.subr.bf16.mxu0 0
    %203 = vmatpush1.bf16.msra.mxu0 0
    %204 = vmatprep.subr.bf16.mxu0 0
    %205 = vmatpush1.bf16.msra.mxu0 0
    %206 = vmatprep.mubr.bf16.mxu0 0
    %207 = vmatmul.mubr.bf16.gmra.mrb[0].mxu0 %v166
    %v208 = vpop.f32.mrb[0].mxu0
    %v209 = vadd.f32 0.0, %v208
    %v210 = vpop.f32.mrb[0].mxu0
    %v211 = vpop.f32.mrb[0].mxu0
    %v212 = vadd.f32 0.0, %v211
    %v213 = vpop.f32.mrb[0].mxu0
    %214 = vdwg.mxu0
    %v215 = vmax.f32 %v209, 0.0
    %v216 = vmax.f32 %v212, 0.0
    %v217 = vpack.c.bf16 %v216, %v215
    %v218 = vld [vmem:[%s3] sm:$0xf]
    %v219 = vld [vmem:[%s3 + $0x4] sm:$0xf]
    %v220 = vld [vmem:[%s3 + $0x8] sm:$0xf]
    %v221 = vld [vmem:[%s3 + $0xc] sm:$0xf]
    %v222 = vld [vmem:[%s3 + $0x10] sm:$0xf]
    %v223 = vld [vmem:[%s3 + $0x14] sm:$0xf]
    %v224 = vld [vmem:[%s3 + $0x18] sm:$0xf]
    %v225 = vld [vmem:[%s3 + $0x1c] sm:$0xf]
    %v226 = vld [vmem:[%s3 + $0x20] sm:$0xf]
    %v227 = vld [vmem:[%s3 + $0x24] sm:$0xf]
    %v228 = vld [vmem:[%s3 + $0x28] sm:$0xf]
    %v229 = vld [vmem:[%s3 + $0x2c] sm:$0xf]
    %v230 = vld [vmem:[%s3 + $0x30] sm:$0xf]
    %v231 = vld [vmem:[%s3 + $0x34] sm:$0xf]
    %v232 = vld [vmem:[%s3 + $0x38] sm:$0x1]
    %v248 = vunpack.c.l.b16 %v218
    %v249 = vunpack.c.l.b16 %v219
    %v250 = vunpack.c.l.b16 %v220
    %v251 = vunpack.c.l.b16 %v221
    %v252 = vunpack.c.l.b16 %v222
    %v253 = vunpack.c.l.b16 %v223
    %v254 = vunpack.c.l.b16 %v224
    %v255 = vunpack.c.l.b16 %v225
    %v256 = vunpack.c.l.b16 %v226
    %v257 = vunpack.c.l.b16 %v227
    %v258 = vunpack.c.l.b16 %v228
    %v259 = vunpack.c.l.b16 %v229
    %v260 = vunpack.c.l.b16 %v230
    %v261 = vunpack.c.l.b16 %v231
    %v262 = vunpack.c.l.b16 %v232
    %v263 = vpack.c.b16 %v249, %v248
    %v264 = vpack.c.b16 %v251, %v250
    %v265 = vpack.c.b16 %v253, %v252
    %v266 = vpack.c.b16 %v255, %v254
    %v267 = vpack.c.b16 %v257, %v256
    %v268 = vpack.c.b16 %v259, %v258
    %v269 = vpack.c.b16 %v261, %v260
    %v270 = vpack.c.b16 %v262, %v262
    %vm278 = vcmask 924672
    %v280 = vsel %vm278, %v217, 0
    %vm282 = vcmask 1040384
    %v283 = vsel 0, 4294967295, 65535
    %v284 = vsel %vm282, %v283, 0
    %v286 = vand.u32 %v270, %v284
    %288 = vmatprep.subr.bf16.mxu0 0
    %289 = vmatpush1.bf16.msra.mxu0 %v263
    %290 = vmatprep.subr.bf16.mxu0 0
    %291 = vmatpush1.bf16.msra.mxu0 %v264
    %292 = vmatprep.subr.bf16.mxu0 0
    %293 = vmatpush1.bf16.msra.mxu0 %v265
    %294 = vmatprep.subr.bf16.mxu0 0
    %295 = vmatpush1.bf16.msra.mxu0 %v266
    %296 = vmatprep.subr.bf16.mxu0 0
    %297 = vmatpush1.bf16.msra.mxu0 %v267
    %298 = vmatprep.subr.bf16.mxu0 0
    %299 = vmatpush1.bf16.msra.mxu0 %v268
    %300 = vmatprep.subr.bf16.mxu0 0
    %301 = vmatpush1.bf16.msra.mxu0 %v269
    %302 = vmatprep.subr.bf16.mxu0 0
    %303 = vmatpush1.bf16.msra.mxu0 %v286
    %304 = vmatprep.subr.bf16.mxu0 0
    %305 = vmatpush1.bf16.msra.mxu0 0
    %306 = vmatprep.subr.bf16.mxu0 0
    %307 = vmatpush1.bf16.msra.mxu0 0
    %308 = vmatprep.subr.bf16.mxu0 0
    %309 = vmatpush1.bf16.msra.mxu0 0
    %310 = vmatprep.subr.bf16.mxu0 0
    %311 = vmatpush1.bf16.msra.mxu0 0
    %312 = vmatprep.subr.bf16.mxu0 0
    %313 = vmatpush1.bf16.msra.mxu0 0
    %314 = vmatprep.subr.bf16.mxu0 0
    %315 = vmatpush1.bf16.msra.mxu0 0
    %316 = vmatprep.subr.bf16.mxu0 0
    %317 = vmatpush1.bf16.msra.mxu0 0
    %318 = vmatprep.subr.bf16.mxu0 0
    %319 = vmatpush1.bf16.msra.mxu0 0
    %320 = vmatprep.mubr.bf16.mxu0 0
    %321 = vmatmul.mubr.bf16.gmra.mrb[0].mxu0 %v280
    %v322 = vpop.f32.mrb[0].mxu0
    %v323 = vadd.f32 0.0, %v322
    %v324 = vpop.f32.mrb[0].mxu0
    %v325 = vpop.f32.mrb[0].mxu0
    %v326 = vadd.f32 0.0, %v325
    %v327 = vpop.f32.mrb[0].mxu0
    %328 = vdwg.mxu0
    %v329 = vmax.f32 %v323, 0.0
    %v330 = vmax.f32 %v326, 0.0
    %v331 = vpack.c.bf16 %v330, %v329
    %v332 = vld [vmem:[%s4] sm:$0xf]
    %v333 = vld [vmem:[%s4 + $0x4] sm:$0xf]
    %v334 = vld [vmem:[%s4 + $0x8] sm:$0xf]
    %v335 = vld [vmem:[%s4 + $0xc] sm:$0xf]
    %v336 = vld [vmem:[%s4 + $0x10] sm:$0xf]
    %v337 = vld [vmem:[%s4 + $0x14] sm:$0xf]
    %v338 = vld [vmem:[%s4 + $0x18] sm:$0xf]
    %v339 = vld [vmem:[%s4 + $0x1c] sm:$0x7]
    %v348 = vunpack.c.l.b16 %v332
    %v349 = vunpack.c.l.b16 %v333
    %v350 = vunpack.c.l.b16 %v334
    %v351 = vunpack.c.l.b16 %v335
    %v352 = vunpack.c.l.b16 %v336
    %v353 = vunpack.c.l.b16 %v337
    %v354 = vunpack.c.l.b16 %v338
    %v355 = vunpack.c.l.b16 %v339
    %v356 = vpack.c.b16 %v349, %v348
    %v357 = vpack.c.b16 %v351, %v350
    %v358 = vpack.c.b16 %v353, %v352
    %v359 = vpack.c.b16 %v355, %v354
    %vm363 = vcmask 498688
    %v365 = vsel %vm363, %v331, 0
    %vm367 = vcmask 1045504
    %vm368 = vcmask 1046528
    %v369 = vsel %vm367, 4294967295, 65535
    %v370 = vsel %vm368, %v369, 0
    %v372 = vand.u32 %v359, %v370
    %374 = vmatprep.subr.bf16.mxu0 0
    %375 = vmatpush1.bf16.msra.mxu0 %v356
    %376 = vmatprep.subr.bf16.mxu0 0
    %377 = vmatpush1.bf16.msra.mxu0 %v357
    %378 = vmatprep.subr.bf16.mxu0 0
    %379 = vmatpush1.bf16.msra.mxu0 %v358
    %380 = vmatprep.subr.bf16.mxu0 0
    %381 = vmatpush1.bf16.msra.mxu0 %v372
    %382 = vmatprep.subr.bf16.mxu0 0
    %383 = vmatpush1.bf16.msra.mxu0 0
    %384 = vmatprep.subr.bf16.mxu0 0
    %385 = vmatpush1.bf16.msra.mxu0 0
    %386 = vmatprep.subr.bf16.mxu0 0
    %387 = vmatpush1.bf16.msra.mxu0 0
    %388 = vmatprep.subr.bf16.mxu0 0
    %389 = vmatpush1.bf16.msra.mxu0 0
    %390 = vmatprep.subr.bf16.mxu0 0
    %391 = vmatpush1.bf16.msra.mxu0 0
    %392 = vmatprep.subr.bf16.mxu0 0
    %393 = vmatpush1.bf16.msra.mxu0 0
    %394 = vmatprep.subr.bf16.mxu0 0
    %395 = vmatpush1.bf16.msra.mxu0 0
    %396 = vmatprep.subr.bf16.mxu0 0
    %397 = vmatpush1.bf16.msra.mxu0 0
    %398 = vmatprep.subr.bf16.mxu0 0
    %399 = vmatpush1.bf16.msra.mxu0 0
    %400 = vmatprep.subr.bf16.mxu0 0
    %401 = vmatpush1.bf16.msra.mxu0 0
    %402 = vmatprep.subr.bf16.mxu0 0
    %403 = vmatpush1.bf16.msra.mxu0 0
    %404 = vmatprep.subr.bf16.mxu0 0
    %405 = vmatpush1.bf16.msra.mxu0 0
    %406 = vmatprep.mubr.bf16.mxu0 0
    %407 = vmatmul.mubr.bf16.gmra.mrb[0].mxu0 %v365
    %v408 = vpop.f32.mrb[0].mxu0
    %v409 = vadd.f32 0.0, %v408
    %v410 = vpop.f32.mrb[0].mxu0
    %v411 = vpop.f32.mrb[0].mxu0
    %v412 = vadd.f32 0.0, %v411
    %v413 = vpop.f32.mrb[0].mxu0
    %414 = vdwg.mxu0
    %v415 = vmax.f32 %v409, 0.0
    %v416 = vmax.f32 %v412, 0.0
    %v417 = vpack.c.bf16 %v416, %v415
    %v419 = vunpack.c.l.b16 %v417
    %v420 = vunpack.c.h.b16 %v417
    %v421 = vpack.c.b16 %v419, %v419
    %v422 = vpack.c.b16 %v420, %v420
    %425 = vst [vmem:[#allocation2] sm:$0xf] %v421
    %426 = vst [vmem:[#allocation2 + $0x4] sm:$0xf] %v422
    // Predicated region
    $region22: #{tpu_custom_call.1} parent=1 // pred_check
      _
    $region23: #{tpu_custom_call.1} parent=1 // pred_check_branch
      %428 = sbr.rel (0) target = $region25
    $region24: #{tpu_custom_call.1} parent=1 // pred_region
      %s430 = ssub.s32 128, 128
      %431 = vsyncadd [#allocation3], %s430
      %s432 = sshll.u32 [#allocation2], 4
      %s433 = int_to_ptr.vmem [resolvable:$true] %s432
      %438 = dma.vmem_to_hbm [thread:$0]  %s433, 128, %s5, [#allocation3], 64, 64, 4
    $region25: #{tpu_custom_call.1} parent=1 // pred_fallthru
      _
    // Predicated region
    $region26: #{tpu_custom_call.1} parent=1 // pred_check
      _
    $region27: #{tpu_custom_call.1} parent=1 // pred_check_branch
      %440 = sbr.rel (0) target = $region29
    $region28: #{tpu_custom_call.1} parent=1 // pred_region
      %441 = dma.done [#allocation3], 128
    $region29: #{tpu_custom_call.1} parent=1 // pred_fallthru
      _
    %442 = vsyncpa [#allocation3], 1

// kernel: tpu_custom_call.1
$region0: #{tpu_custom_call.1}
  #allocation0 [shape = 'u32[]', space=smem, size = 0x4, offset = 0x4, fixed_abs, tag = 'smem constant byte address 0x4 - core index']
  #allocation1 [shape = 'u32[144,128]{1,0:T(1,128)}', space=vmem, size = 0x12000, scoped, tag = 'internal scratch']
  %s0 = inlined_call_operand.vmem [shape: bf16[16,85], index: 0, kind: input, shape index: {}]
  %s1 = inlined_call_operand.vmem [shape: bf16[85,71], index: 1, kind: input, shape index: {}]
  %s2 = inlined_call_operand.vmem [shape: bf16[71,113], index: 2, kind: input, shape index: {}]
  %s3 = inlined_call_operand.vmem [shape: bf16[113,61], index: 3, kind: input, shape index: {}]
  %s4 = inlined_call_operand.vmem [shape: bf16[61,128], index: 4, kind: input, shape index: {}]
  %s5 = inlined_call_operand.hbm [shape: bf16[16,128], index: 5, kind: output, shape index: {}]
  %s6 = sld [smem:[#allocation0]]
  $region30: #{tpu_custom_call.1} parent=0
    _
  %s8 = ssub.s32 1, %s6
  %s9 = scalar_select 0, %s8, %s6
  $region1: #{tpu_custom_call.1} parent=0
    #allocation2 [shape = 'u8[4096]{0}', space=vmem, size = 0x1000, scoped, tag = 'output window, operand 0, single buffered']
    #allocation3 [shape = 's32[1]{0}', space=sflag, size = 0x4, scoped, tag = 'scoped memory for tpu_custom_call.1']
    %10 = vsyncpa [#allocation3], 0
    // Predicated region
    $region2: #{tpu_custom_call.1} parent=1 // pred_check
      _
    $region3: #{tpu_custom_call.1} parent=1 // pred_check_branch
      %12 = sbr.rel (0) target = $region5
    $region4: #{tpu_custom_call.1} parent=1 // pred_region
      _
    $region5: #{tpu_custom_call.1} parent=1 // pred_fallthru
      _
    // Predicated region
    $region6: #{tpu_custom_call.1} parent=1 // pred_check
      _
    $region7: #{tpu_custom_call.1} parent=1 // pred_check_branch
      %14 = sbr.rel (0) target = $region9
    $region8: #{tpu_custom_call.1} parent=1 // pred_region
      _
    $region9: #{tpu_custom_call.1} parent=1 // pred_fallthru
      _
    // Predicated region
    $region10: #{tpu_custom_call.1} parent=1 // pred_check
      _
    $region11: #{tpu_custom_call.1} parent=1 // pred_check_branch
      %16 = sbr.rel (0) target = $region13
    $region12: #{tpu_custom_call.1} parent=1 // pred_region
      _
    $region13: #{tpu_custom_call.1} parent=1 // pred_fallthru
      _
    // Predicated region
    $region14: #{tpu_custom_call.1} parent=1 // pred_check
      _
    $region15: #{tpu_custom_call.1} parent=1 // pred_check_branch
      %18 = sbr.rel (0) target = $region17
    $region16: #{tpu_custom_call.1} parent=1 // pred_region
      _
    $region17: #{tpu_custom_call.1} parent=1 // pred_fallthru
      _
    // Predicated region
    $region18: #{tpu_custom_call.1} parent=1 // pred_check
      _
    $region19: #{tpu_custom_call.1} parent=1 // pred_check_branch
      %20 = sbr.rel (0) target = $region21
    $region20: #{tpu_custom_call.1} parent=1 // pred_region
      _
    $region21: #{tpu_custom_call.1} parent=1 // pred_fallthru
      _
    %v22 = vld [vmem:[%s0] sm:$0xf]
    %v23 = vld [vmem:[%s0 + $0x4] sm:$0xf]
    %v24 = vld [vmem:[%s1] sm:$0xf]
    %v25 = vld [vmem:[%s1 + $0x4] sm:$0xf]
    %v26 = vld [vmem:[%s1 + $0x8] sm:$0xf]
    %v27 = vld [vmem:[%s1 + $0xc] sm:$0xf]
    %v28 = vld [vmem:[%s1 + $0x10] sm:$0xf]
    %v29 = vld [vmem:[%s1 + $0x14] sm:$0xf]
    %v30 = vld [vmem:[%s1 + $0x18] sm:$0xf]
    %v31 = vld [vmem:[%s1 + $0x1c] sm:$0xf]
    %v32 = vld [vmem:[%s1 + $0x20] sm:$0xf]
    %v33 = vld [vmem:[%s1 + $0x24] sm:$0xf]
    %v34 = vld [vmem:[%s1 + $0x28] sm:$0x7]
    %v37 = vunpack.c.l.b16 %v22
    %v38 = vunpack.c.l.b16 %v23
    %v39 = vpack.c.b16 %v38, %v37
    %v51 = vunpack.c.l.b16 %v24
    %v52 = vunpack.c.l.b16 %v25
    %v53 = vunpack.c.l.b16 %v26
    %v54 = vunpack.c.l.b16 %v27
    %v55 = vunpack.c.l.b16 %v28
    %v56 = vunpack.c.l.b16 %v29
    %v57 = vunpack.c.l.b16 %v30
    %v58 = vunpack.c.l.b16 %v31
    %v59 = vunpack.c.l.b16 %v32
    %v60 = vunpack.c.l.b16 %v33
    %v61 = vunpack.c.l.b16 %v34
    %v62 = vpack.c.b16 %v52, %v51
    %v63 = vpack.c.b16 %v54, %v53
    %v64 = vpack.c.b16 %v56, %v55
    %v65 = vpack.c.b16 %v58, %v57
    %v66 = vpack.c.b16 %v60, %v59
    %v67 = vpack.c.b16 %v61, %v61
    %vm73 = vcmask 695296
    %v75 = vsel %vm73, %v39, 0
    %vm77 = vcmask 1041408
    %vm78 = vcmask 1042432
    %v79 = vsel %vm77, 4294967295, 65535
    %v80 = vsel %vm78, %v79, 0
    %v82 = vand.u32 %v67, %v80
    %84 = vmatprep.subr.bf16.mxu0 0
    %85 = vmatpush1.bf16.msra.mxu0 %v62
    %86 = vmatprep.subr.bf16.mxu0 0
    %87 = vmatpush1.bf16.msra.mxu0 %v63
    %88 = vmatprep.subr.bf16.mxu0 0
    %89 = vmatpush1.bf16.msra.mxu0 %v64
    %90 = vmatprep.subr.bf16.mxu0 0
    %91 = vmatpush1.bf16.msra.mxu0 %v65
    %92 = vmatprep.subr.bf16.mxu0 0
    %93 = vmatpush1.bf16.msra.mxu0 %v66
    %94 = vmatprep.subr.bf16.mxu0 0
    %95 = vmatpush1.bf16.msra.mxu0 %v82
    %96 = vmatprep.subr.bf16.mxu0 0
    %97 = vmatpush1.bf16.msra.mxu0 0
    %98 = vmatprep.subr.bf16.mxu0 0
    %99 = vmatpush1.bf16.msra.mxu0 0
    %100 = vmatprep.subr.bf16.mxu0 0
    %101 = vmatpush1.bf16.msra.mxu0 0
    %102 = vmatprep.subr.bf16.mxu0 0
    %103 = vmatpush1.bf16.msra.mxu0 0
    %104 = vmatprep.subr.bf16.mxu0 0
    %105 = vmatpush1.bf16.msra.mxu0 0
    %106 = vmatprep.subr.bf16.mxu0 0
    %107 = vmatpush1.bf16.msra.mxu0 0
    %108 = vmatprep.subr.bf16.mxu0 0
    %109 = vmatpush1.bf16.msra.mxu0 0
    %110 = vmatprep.subr.bf16.mxu0 0
    %111 = vmatpush1.bf16.msra.mxu0 0
    %112 = vmatprep.subr.bf16.mxu0 0
    %113 = vmatpush1.bf16.msra.mxu0 0
    %114 = vmatprep.subr.bf16.mxu0 0
    %115 = vmatpush1.bf16.msra.mxu0 0
    %116 = vmatprep.mubr.bf16.mxu0 0
    %117 = vmatmul.mubr.bf16.gmra.mrb[0].mxu0 %v75
    %v118 = vpop.f32.mrb[0].mxu0
    %v119 = vadd.f32 0.0, %v118
    %v120 = vpop.f32.mrb[0].mxu0
    %v121 = vpop.f32.mrb[0].mxu0
    %v122 = vadd.f32 0.0, %v121
    %v123 = vpop.f32.mrb[0].mxu0
    %124 = vdwg.mxu0
    %v125 = vmax.f32 %v119, 0.0
    %v126 = vmax.f32 %v122, 0.0
    %v127 = vpack.c.bf16 %v126, %v125
    %v128 = vld [vmem:[%s2] sm:$0xf]
    %v129 = vld [vmem:[%s2 + $0x4] sm:$0xf]
    %v130 = vld [vmem:[%s2 + $0x8] sm:$0xf]
    %v131 = vld [vmem:[%s2 + $0xc] sm:$0xf]
    %v132 = vld [vmem:[%s2 + $0x10] sm:$0xf]
    %v133 = vld [vmem:[%s2 + $0x14] sm:$0xf]
    %v134 = vld [vmem:[%s2 + $0x18] sm:$0xf]
    %v135 = vld [vmem:[%s2 + $0x1c] sm:$0xf]
    %v136 = vld [vmem:[%s2 + $0x20] sm:$0xf]
    %v146 = vunpack.c.l.b16 %v128
    %v147 = vunpack.c.l.b16 %v129
    %v148 = vunpack.c.l.b16 %v130
    %v149 = vunpack.c.l.b16 %v131
    %v150 = vunpack.c.l.b16 %v132
    %v151 = vunpack.c.l.b16 %v133
    %v152 = vunpack.c.l.b16 %v134
    %v153 = vunpack.c.l.b16 %v135
    %v154 = vunpack.c.l.b16 %v136
    %v155 = vpack.c.b16 %v147, %v146
    %v156 = vpack.c.b16 %v149, %v148
    %v157 = vpack.c.b16 %v151, %v150
    %v158 = vpack.c.b16 %v153, %v152
    %v159 = vpack.c.b16 %v154, %v154
    %vm164 = vcmask 580608
    %v166 = vsel %vm164, %v127, 0
    %vm168 = vcmask 1043456
    %v169 = vsel %vm78, 4294967295, 65535
    %v170 = vsel %vm168, %v169, 0
    %v172 = vand.u32 %v159, %v170
    %174 = vmatprep.subr.bf16.mxu0 0
    %175 = vmatpush1.bf16.msra.mxu0 %v155
    %176 = vmatprep.subr.bf16.mxu0 0
    %177 = vmatpush1.bf16.msra.mxu0 %v156
    %178 = vmatprep.subr.bf16.mxu0 0
    %179 = vmatpush1.bf16.msra.mxu0 %v157
    %180 = vmatprep.subr.bf16.mxu0 0
    %181 = vmatpush1.bf16.msra.mxu0 %v158
    %182 = vmatprep.subr.bf16.mxu0 0
    %183 = vmatpush1.bf16.msra.mxu0 %v172
    %184 = vmatprep.subr.bf16.mxu0 0
    %185 = vmatpush1.bf16.msra.mxu0 0
    %186 = vmatprep.subr.bf16.mxu0 0
    %187 = vmatpush1.bf16.msra.mxu0 0
    %188 = vmatprep.subr.bf16.mxu0 0
    %189 = vmatpush1.bf16.msra.mxu0 0
    %190 = vmatprep.subr.bf16.mxu0 0
    %191 = vmatpush1.bf16.msra.mxu0 0
    %192 = vmatprep.subr.bf16.mxu0 0
    %193 = vmatpush1.bf16.msra.mxu0 0
    %194 = vmatprep.subr.bf16.mxu0 0
    %195 = vmatpush1.bf16.msra.mxu0 0
    %196 = vmatprep.subr.bf16.mxu0 0
    %197 = vmatpush1.bf16.msra.mxu0 0
    %198 = vmatprep.subr.bf16.mxu0 0
    %199 = vmatpush1.bf16.msra.mxu0 0
    %200 = vmatprep.subr.bf16.mxu0 0
    %201 = vmatpush1.bf16.msra.mxu0 0
    %202 = vmatprep.subr.bf16.mxu0 0
    %203 = vmatpush1.bf16.msra.mxu0 0
    %204 = vmatprep.subr.bf16.mxu0 0
    %205 = vmatpush1.bf16.msra.mxu0 0
    %206 = vmatprep.mubr.bf16.mxu0 0
    %207 = vmatmul.mubr.bf16.gmra.mrb[0].mxu0 %v166
    %v208 = vpop.f32.mrb[0].mxu0
    %v209 = vadd.f32 0.0, %v208
    %v210 = vpop.f32.mrb[0].mxu0
    %v211 = vpop.f32.mrb[0].mxu0
    %v212 = vadd.f32 0.0, %v211
    %v213 = vpop.f32.mrb[0].mxu0
    %214 = vdwg.mxu0
    %v215 = vmax.f32 %v209, 0.0
    %v216 = vmax.f32 %v212, 0.0
    %v217 = vpack.c.bf16 %v216, %v215
    %v218 = vld [vmem:[%s3] sm:$0xf]
    %v219 = vld [vmem:[%s3 + $0x4] sm:$0xf]
    %v220 = vld [vmem:[%s3 + $0x8] sm:$0xf]
    %v221 = vld [vmem:[%s3 + $0xc] sm:$0xf]
    %v222 = vld [vmem:[%s3 + $0x10] sm:$0xf]
    %v223 = vld [vmem:[%s3 + $0x14] sm:$0xf]
    %v224 = vld [vmem:[%s3 + $0x18] sm:$0xf]
    %v225 = vld [vmem:[%s3 + $0x1c] sm:$0xf]
    %v226 = vld [vmem:[%s3 + $0x20] sm:$0xf]
    %v227 = vld [vmem:[%s3 + $0x24] sm:$0xf]
    %v228 = vld [vmem:[%s3 + $0x28] sm:$0xf]
    %v229 = vld [vmem:[%s3 + $0x2c] sm:$0xf]
    %v230 = vld [vmem:[%s3 + $0x30] sm:$0xf]
    %v231 = vld [vmem:[%s3 + $0x34] sm:$0xf]
    %v232 = vld [vmem:[%s3 + $0x38] sm:$0x1]
    %v248 = vunpack.c.l.b16 %v218
    %v249 = vunpack.c.l.b16 %v219
    %v250 = vunpack.c.l.b16 %v220
    %v251 = vunpack.c.l.b16 %v221
    %v252 = vunpack.c.l.b16 %v222
    %v253 = vunpack.c.l.b16 %v223
    %v254 = vunpack.c.l.b16 %v224
    %v255 = vunpack.c.l.b16 %v225
    %v256 = vunpack.c.l.b16 %v226
    %v257 = vunpack.c.l.b16 %v227
    %v258 = vunpack.c.l.b16 %v228
    %v259 = vunpack.c.l.b16 %v229
    %v260 = vunpack.c.l.b16 %v230
    %v261 = vunpack.c.l.b16 %v231
    %v262 = vunpack.c.l.b16 %v232
    %v263 = vpack.c.b16 %v249, %v248
    %v264 = vpack.c.b16 %v251, %v250
    %v265 = vpack.c.b16 %v253, %v252
    %v266 = vpack.c.b16 %v255, %v254
    %v267 = vpack.c.b16 %v257, %v256
    %v268 = vpack.c.b16 %v259, %v258
    %v269 = vpack.c.b16 %v261, %v260
    %v270 = vpack.c.b16 %v262, %v262
    %vm278 = vcmask 924672
    %v280 = vsel %vm278, %v217, 0
    %vm282 = vcmask 1040384
    %v283 = vsel 0, 4294967295, 65535
    %v284 = vsel %vm282, %v283, 0
    %v286 = vand.u32 %v270, %v284
    %288 = vmatprep.subr.bf16.mxu0 0
    %289 = vmatpush1.bf16.msra.mxu0 %v263
    %290 = vmatprep.subr.bf16.mxu0 0
    %291 = vmatpush1.bf16.msra.mxu0 %v264
    %292 = vmatprep.subr.bf16.mxu0 0
    %293 = vmatpush1.bf16.msra.mxu0 %v265
    %294 = vmatprep.subr.bf16.mxu0 0
    %295 = vmatpush1.bf16.msra.mxu0 %v266
    %296 = vmatprep.subr.bf16.mxu0 0
    %297 = vmatpush1.bf16.msra.mxu0 %v267
    %298 = vmatprep.subr.bf16.mxu0 0
    %299 = vmatpush1.bf16.msra.mxu0 %v268
    %300 = vmatprep.subr.bf16.mxu0 0
    %301 = vmatpush1.bf16.msra.mxu0 %v269
    %302 = vmatprep.subr.bf16.mxu0 0
    %303 = vmatpush1.bf16.msra.mxu0 %v286
    %304 = vmatprep.subr.bf16.mxu0 0
    %305 = vmatpush1.bf16.msra.mxu0 0
    %306 = vmatprep.subr.bf16.mxu0 0
    %307 = vmatpush1.bf16.msra.mxu0 0
    %308 = vmatprep.subr.bf16.mxu0 0
    %309 = vmatpush1.bf16.msra.mxu0 0
    %310 = vmatprep.subr.bf16.mxu0 0
    %311 = vmatpush1.bf16.msra.mxu0 0
    %312 = vmatprep.subr.bf16.mxu0 0
    %313 = vmatpush1.bf16.msra.mxu0 0
    %314 = vmatprep.subr.bf16.mxu0 0
    %315 = vmatpush1.bf16.msra.mxu0 0
    %316 = vmatprep.subr.bf16.mxu0 0
    %317 = vmatpush1.bf16.msra.mxu0 0
    %318 = vmatprep.subr.bf16.mxu0 0
    %319 = vmatpush1.bf16.msra.mxu0 0
    %320 = vmatprep.mubr.bf16.mxu0 0
    %321 = vmatmul.mubr.bf16.gmra.mrb[0].mxu0 %v280
    %v322 = vpop.f32.mrb[0].mxu0
    %v323 = vadd.f32 0.0, %v322
    %v324 = vpop.f32.mrb[0].mxu0
    %v325 = vpop.f32.mrb[0].mxu0
    %v326 = vadd.f32 0.0, %v325
    %v327 = vpop.f32.mrb[0].mxu0
    %328 = vdwg.mxu0
    %v329 = vmax.f32 %v323, 0.0
    %v330 = vmax.f32 %v326, 0.0
    %v331 = vpack.c.bf16 %v330, %v329
    %v332 = vld [vmem:[%s4] sm:$0xf]
    %v333 = vld [vmem:[%s4 + $0x4] sm:$0xf]
    %v334 = vld [vmem:[%s4 + $0x8] sm:$0xf]
    %v335 = vld [vmem:[%s4 + $0xc] sm:$0xf]
    %v336 = vld [vmem:[%s4 + $0x10] sm:$0xf]
    %v337 = vld [vmem:[%s4 + $0x14] sm:$0xf]
    %v338 = vld [vmem:[%s4 + $0x18] sm:$0xf]
    %v339 = vld [vmem:[%s4 + $0x1c] sm:$0x7]
    %v348 = vunpack.c.l.b16 %v332
    %v349 = vunpack.c.l.b16 %v333
    %v350 = vunpack.c.l.b16 %v334
    %v351 = vunpack.c.l.b16 %v335
    %v352 = vunpack.c.l.b16 %v336
    %v353 = vunpack.c.l.b16 %v337
    %v354 = vunpack.c.l.b16 %v338
    %v355 = vunpack.c.l.b16 %v339
    %v356 = vpack.c.b16 %v349, %v348
    %v357 = vpack.c.b16 %v351, %v350
    %v358 = vpack.c.b16 %v353, %v352
    %v359 = vpack.c.b16 %v355, %v354
    %vm363 = vcmask 498688
    %v365 = vsel %vm363, %v331, 0
    %vm367 = vcmask 1045504
    %vm368 = vcmask 1046528
    %v369 = vsel %vm367, 4294967295, 65535
    %v370 = vsel %vm368, %v369, 0
    %v372 = vand.u32 %v359, %v370
    %374 = vmatprep.subr.bf16.mxu0 0
    %375 = vmatpush1.bf16.msra.mxu0 %v356
    %376 = vmatprep.subr.bf16.mxu0 0
    %377 = vmatpush1.bf16.msra.mxu0 %v357
    %378 = vmatprep.subr.bf16.mxu0 0
    %379 = vmatpush1.bf16.msra.mxu0 %v358
    %380 = vmatprep.subr.bf16.mxu0 0
    %381 = vmatpush1.bf16.msra.mxu0 %v372
    %382 = vmatprep.subr.bf16.mxu0 0
    %383 = vmatpush1.bf16.msra.mxu0 0
    %384 = vmatprep.subr.bf16.mxu0 0
    %385 = vmatpush1.bf16.msra.mxu0 0
    %386 = vmatprep.subr.bf16.mxu0 0
    %387 = vmatpush1.bf16.msra.mxu0 0
    %388 = vmatprep.subr.bf16.mxu0 0
    %389 = vmatpush1.bf16.msra.mxu0 0
    %390 = vmatprep.subr.bf16.mxu0 0
    %391 = vmatpush1.bf16.msra.mxu0 0
    %392 = vmatprep.subr.bf16.mxu0 0
    %393 = vmatpush1.bf16.msra.mxu0 0
    %394 = vmatprep.subr.bf16.mxu0 0
    %395 = vmatpush1.bf16.msra.mxu0 0
    %396 = vmatprep.subr.bf16.mxu0 0
    %397 = vmatpush1.bf16.msra.mxu0 0
    %398 = vmatprep.subr.bf16.mxu0 0
    %399 = vmatpush1.bf16.msra.mxu0 0
    %400 = vmatprep.subr.bf16.mxu0 0
    %401 = vmatpush1.bf16.msra.mxu0 0
    %402 = vmatprep.subr.bf16.mxu0 0
    %403 = vmatpush1.bf16.msra.mxu0 0
    %404 = vmatprep.subr.bf16.mxu0 0
    %405 = vmatpush1.bf16.msra.mxu0 0
    %406 = vmatprep.mubr.bf16.mxu0 0
    %407 = vmatmul.mubr.bf16.gmra.mrb[0].mxu0 %v365
    %v408 = vpop.f32.mrb[0].mxu0
    %v409 = vadd.f32 0.0, %v408
    %v410 = vpop.f32.mrb[0].mxu0
    %v411 = vpop.f32.mrb[0].mxu0
    %v412 = vadd.f32 0.0, %v411
    %v413 = vpop.f32.mrb[0].mxu0
    %414 = vdwg.mxu0
    %v415 = vmax.f32 %v409, 0.0
    %v416 = vmax.f32 %v412, 0.0
    %v417 = vpack.c.bf16 %v416, %v415
    %v419 = vunpack.c.l.b16 %v417
    %v420 = vunpack.c.h.b16 %v417
    %v421 = vpack.c.b16 %v419, %v419
    %v422 = vpack.c.b16 %v420, %v420
    %425 = vst [vmem:[#allocation2] sm:$0xf] %v421
    %426 = vst [vmem:[#allocation2 + $0x4] sm:$0xf] %v422
    // Predicated region
    $region22: #{tpu_custom_call.1} parent=1 // pred_check
      _
    $region23: #{tpu_custom_call.1} parent=1 // pred_check_branch
      %428 = sbr.rel (0) target = $region25
    $region24: #{tpu_custom_call.1} parent=1 // pred_region
      %s430 = ssub.s32 128, 128
      %431 = vsyncadd [#allocation3], %s430
      %s432 = sshll.u32 [#allocation2], 4
      %s433 = int_to_ptr.vmem [resolvable:$true] %s432
      %438 = dma.vmem_to_hbm [thread:$0]  %s433, 128, %s5, [#allocation3], 64, 64, 4
    $region25: #{tpu_custom_call.1} parent=1 // pred_fallthru
      _
    // Predicated region
    $region26: #{tpu_custom_call.1} parent=1 // pred_check
      _
    $region27: #{tpu_custom_call.1} parent=1 // pred_check_branch
      %440 = sbr.rel (0) target = $region29
    $region28: #{tpu_custom_call.1} parent=1 // pred_region
      %441 = dma.done [#allocation3], 128
    $region29: #{tpu_custom_call.1} parent=1 // pred_fallthru
      _
    %442 = vsyncpa [#allocation3], 1

</llo_original>
